<compile_context>
chip_gen: v5e
topology: v5e:2x2
jax: 0.10.0
libtpu: 0.0.40
codegen_flags: <defaults>
</compile_context>

<pallas_src>
import jax
import jax.numpy as jnp
from jax.experimental import pallas as pl
from jax.experimental.pallas import tpu as pltpu


def mlp_softmax_kernel(x_ref,
                       w0_ref, b0_ref,
                       w1_ref, b1_ref,
                       w2_ref, b2_ref,
                       w3_ref, b3_ref,
                       o_ref):
    x = x_ref[...]  # bf16 [TB, 784]

    # Linear 0 (784 -> 128)  -- no ReLU (matches module construction)
    h = jnp.dot(x, w0_ref[...], preferred_element_type=jnp.float32) + b0_ref[...]

    # Linear 1 (128 -> 64) + ReLU
    h = jnp.dot(h.astype(jnp.bfloat16), w1_ref[...],
                preferred_element_type=jnp.float32) + b1_ref[...]
    h = jnp.maximum(h, 0.0)

    # Linear 2 (64 -> 32) + ReLU
    h = jnp.dot(h.astype(jnp.bfloat16), w2_ref[...],
                preferred_element_type=jnp.float32) + b2_ref[...]
    h = jnp.maximum(h, 0.0)

    # Linear 3 (32 -> 10)
    logits = jnp.dot(h.astype(jnp.bfloat16), w3_ref[...],
                     preferred_element_type=jnp.float32) + b3_ref[...]

    # Softmax over features (PyTorch dim=1 == last axis in [B, F] layout).
    m = jnp.max(logits, axis=-1, keepdims=True)
    e = jnp.exp(logits - m)
    denom = jnp.sum(e, axis=-1, keepdims=True)
    o_ref[...] = (e * pl.reciprocal(denom, approx=True)).astype(o_ref.dtype)


def _round_up(a, m):
    return ((a + m - 1) // m) * m


def rl_growing_agent_forward(x, params, *, block_b=256):
    """x: [B, input_size] float32 (or bf16).
    params: list of (W_t [in,out] bf16, b [1,out] f32)."""
    B, in_dim = x.shape
    (w0, b0), (w1, b1), (w2, b2), (w3, b3) = params
    out_dim = w3.shape[1]

    # Batch tile: multiple of 8 sublanes, capped at block_b; pad B up to it.
    tb = min(block_b, _round_up(B, 8))
    padded_b = _round_up(B, tb)
    if padded_b != B:
        x = jnp.pad(x, ((0, padded_b - B), (0, 0)))
    x = x.astype(jnp.bfloat16)

    # Weights / biases: full block, same block for every grid step -> stay
    # resident in VMEM; only the activation tile is re-DMA'd per step.
    full = lambda arr: pl.BlockSpec(arr.shape, lambda i: (0, 0))

    out = pl.pallas_call(
        mlp_softmax_kernel,
        out_shape=jax.ShapeDtypeStruct((padded_b, out_dim), jnp.float32),
        grid_spec=pltpu.PrefetchScalarGridSpec(
            num_scalar_prefetch=0,
            grid=(padded_b // tb,),
            in_specs=[
                pl.BlockSpec((tb, in_dim), lambda i: (i, 0)),
                full(w0), full(b0),
                full(w1), full(b1),
                full(w2), full(b2),
                full(w3), full(b3),
            ],
            out_specs=pl.BlockSpec((tb, out_dim), lambda i: (i, 0)),
        ),
        compiler_params=pltpu.CompilerParams(
            dimension_semantics=("parallel",)),
    )(x, w0, b0, w1, b1, w2, b2, w3, b3)
    return out[:B]


def init_linear(key, in_f, out_f):
    """Deterministic PyTorch-style init: U(-1/sqrt(in_f), 1/sqrt(in_f)).
    Weight stored transposed as [in_f, out_f] in bf16; bias [1, out_f] f32."""
    kw, kb = jax.random.split(key)
    bound = 1.0 / jnp.sqrt(float(in_f))
    w_t = jax.random.uniform(kw, (in_f, out_f), jnp.float32, -bound, bound)
    b = jax.random.uniform(kb, (1, out_f), jnp.float32, -bound, bound)
    return w_t.astype(jnp.bfloat16), b


def reference_forward(x, params):
    """Pure-JAX reference mirroring the kernel's precision policy
    (bf16 MXU inputs, f32 accumulation / epilogue)."""
    (w0, b0), (w1, b1), (w2, b2), (w3, b3) = params
    h = jnp.dot(x.astype(jnp.bfloat16), w0,
                preferred_element_type=jnp.float32) + b0        # no ReLU
    h = jnp.maximum(jnp.dot(h.astype(jnp.bfloat16), w1,
                            preferred_element_type=jnp.float32) + b1, 0.0)
    h = jnp.maximum(jnp.dot(h.astype(jnp.bfloat16), w2,
                            preferred_element_type=jnp.float32) + b2, 0.0)
    logits = jnp.dot(h.astype(jnp.bfloat16), w3,
                     preferred_element_type=jnp.float32) + b3
    return jax.nn.softmax(logits, axis=1)


if __name__ == "__main__":
    input_size, output_size = 784, 10
    hidden_sizes = [128, 64, 32]

    key = jax.random.PRNGKey(0)
    keys = jax.random.split(key, 6)

    dims = [input_size] + hidden_sizes + [output_size]
    params = [init_linear(keys[i], dims[i], dims[i + 1]) for i in range(4)]

    # Small single-agent batch (spec-consistent) and a multi-tile batch that
    # exercises the pipelined grid / padding path.
    for b_idx, batch in enumerate((2, 300)):
        x = jax.random.normal(keys[4 + b_idx], (batch, input_size), jnp.float32)

        out = rl_growing_agent_forward(x, params)
        out = jax.block_until_ready(out)

        ref = reference_forward(x, params)
        assert out.shape == (batch, output_size)
        assert jnp.allclose(out, ref, atol=5e-3, rtol=5e-3), "mismatch vs reference"
        assert jnp.allclose(jnp.sum(out, axis=1), 1.0, atol=5e-3), \
            "softmax rows must sum to 1"

    print("KERNEL_OK")
</pallas_src>

<mosaic_0001>
module attributes {stable_mosaic.version = 11 : i64} {
  func.func @mlp_softmax_kernel(%arg0: i32, %arg1: memref<8x784xbf16, #tpu.memory_space<vmem>>, %arg2: memref<784x128xbf16, #tpu.memory_space<vmem>>, %arg3: memref<1x128xf32, #tpu.memory_space<vmem>>, %arg4: memref<128x64xbf16, #tpu.memory_space<vmem>>, %arg5: memref<1x64xf32, #tpu.memory_space<vmem>>, %arg6: memref<64x32xbf16, #tpu.memory_space<vmem>>, %arg7: memref<1x32xf32, #tpu.memory_space<vmem>>, %arg8: memref<32x10xbf16, #tpu.memory_space<vmem>>, %arg9: memref<1x10xf32, #tpu.memory_space<vmem>>, %arg10: memref<8x10xf32, #tpu.memory_space<vmem>>) attributes {dimension_semantics = [#tpu.dimension_semantics<parallel>], iteration_bounds = array<i64: 1>, scalar_prefetch = 0 : i64, scratch_operands = 0 : i64, tpu.core_type = #tpu.core_type<tc>, window_params = [{transform_indices = @transform_0, window_bounds = array<i64: 8, 784>}, {pipeline_mode = #tpu.pipeline_mode<synchronous>, transform_indices = @transform_1, window_bounds = array<i64: 784, 128>}, {pipeline_mode = #tpu.pipeline_mode<synchronous>, transform_indices = @transform_2, window_bounds = array<i64: 1, 128>}, {pipeline_mode = #tpu.pipeline_mode<synchronous>, transform_indices = @transform_3, window_bounds = array<i64: 128, 64>}, {pipeline_mode = #tpu.pipeline_mode<synchronous>, transform_indices = @transform_4, window_bounds = array<i64: 1, 64>}, {pipeline_mode = #tpu.pipeline_mode<synchronous>, transform_indices = @transform_5, window_bounds = array<i64: 64, 32>}, {pipeline_mode = #tpu.pipeline_mode<synchronous>, transform_indices = @transform_6, window_bounds = array<i64: 1, 32>}, {pipeline_mode = #tpu.pipeline_mode<synchronous>, transform_indices = @transform_7, window_bounds = array<i64: 32, 10>}, {pipeline_mode = #tpu.pipeline_mode<synchronous>, transform_indices = @transform_8, window_bounds = array<i64: 1, 10>}, {transform_indices = @transform_9, window_bounds = array<i64: 8, 10>}]} {
    %c0 = arith.constant 0 : index
    %c0_0 = arith.constant 0 : index
    %0 = vector.load %arg1[%c0, %c0_0] : memref<8x784xbf16, #tpu.memory_space<vmem>>, vector<8x784xbf16>
    %c0_1 = arith.constant 0 : index
    %c0_2 = arith.constant 0 : index
    %1 = vector.load %arg2[%c0_1, %c0_2] : memref<784x128xbf16, #tpu.memory_space<vmem>>, vector<784x128xbf16>
    %cst = arith.constant dense<0.000000e+00> : vector<8x128xf32>
    %2 = tpu.matmul %0, %1, %cst {dimension_numbers = #tpu.dot_dimension_numbers<[1], [0], [0], [1], [0, 0, 1, 1], [], []>} : vector<8x784xbf16>, vector<784x128xbf16>, vector<8x128xf32> -> vector<8x128xf32>
    %c0_3 = arith.constant 0 : index
    %c0_4 = arith.constant 0 : index
    %3 = vector.load %arg3[%c0_3, %c0_4] : memref<1x128xf32, #tpu.memory_space<vmem>>, vector<1x128xf32>
    %4 = vector.broadcast %3 : vector<1x128xf32> to vector<8x128xf32>
    %5 = arith.addf %2, %4 : vector<8x128xf32>
    %6 = arith.truncf %5 : vector<8x128xf32> to vector<8x128xbf16>
    %c0_5 = arith.constant 0 : index
    %c0_6 = arith.constant 0 : index
    %7 = vector.load %arg4[%c0_5, %c0_6] : memref<128x64xbf16, #tpu.memory_space<vmem>>, vector<128x64xbf16>
    %cst_7 = arith.constant dense<0.000000e+00> : vector<8x64xf32>
    %8 = tpu.matmul %6, %7, %cst_7 {dimension_numbers = #tpu.dot_dimension_numbers<[1], [0], [0], [1], [0, 0, 1, 1], [], []>} : vector<8x128xbf16>, vector<128x64xbf16>, vector<8x64xf32> -> vector<8x64xf32>
    %c0_8 = arith.constant 0 : index
    %c0_9 = arith.constant 0 : index
    %9 = vector.load %arg5[%c0_8, %c0_9] : memref<1x64xf32, #tpu.memory_space<vmem>>, vector<1x64xf32>
    %10 = vector.broadcast %9 : vector<1x64xf32> to vector<8x64xf32>
    %11 = arith.addf %8, %10 : vector<8x64xf32>
    %cst_10 = arith.constant 0.000000e+00 : f32
    %12 = vector.broadcast %cst_10 : f32 to vector<8x64xf32>
    %13 = arith.maximumf %11, %12 : vector<8x64xf32>
    %14 = arith.truncf %13 : vector<8x64xf32> to vector<8x64xbf16>
    %c0_11 = arith.constant 0 : index
    %c0_12 = arith.constant 0 : index
    %15 = vector.load %arg6[%c0_11, %c0_12] : memref<64x32xbf16, #tpu.memory_space<vmem>>, vector<64x32xbf16>
    %cst_13 = arith.constant dense<0.000000e+00> : vector<8x32xf32>
    %16 = tpu.matmul %14, %15, %cst_13 {dimension_numbers = #tpu.dot_dimension_numbers<[1], [0], [0], [1], [0, 0, 1, 1], [], []>} : vector<8x64xbf16>, vector<64x32xbf16>, vector<8x32xf32> -> vector<8x32xf32>
    %c0_14 = arith.constant 0 : index
    %c0_15 = arith.constant 0 : index
    %17 = vector.load %arg7[%c0_14, %c0_15] : memref<1x32xf32, #tpu.memory_space<vmem>>, vector<1x32xf32>
    %18 = vector.broadcast %17 : vector<1x32xf32> to vector<8x32xf32>
    %19 = arith.addf %16, %18 : vector<8x32xf32>
    %cst_16 = arith.constant 0.000000e+00 : f32
    %20 = vector.broadcast %cst_16 : f32 to vector<8x32xf32>
    %21 = arith.maximumf %19, %20 : vector<8x32xf32>
    %22 = arith.truncf %21 : vector<8x32xf32> to vector<8x32xbf16>
    %c0_17 = arith.constant 0 : index
    %c0_18 = arith.constant 0 : index
    %23 = vector.load %arg8[%c0_17, %c0_18] : memref<32x10xbf16, #tpu.memory_space<vmem>>, vector<32x10xbf16>
    %cst_19 = arith.constant dense<0.000000e+00> : vector<8x10xf32>
    %24 = tpu.matmul %22, %23, %cst_19 {dimension_numbers = #tpu.dot_dimension_numbers<[1], [0], [0], [1], [0, 0, 1, 1], [], []>} : vector<8x32xbf16>, vector<32x10xbf16>, vector<8x10xf32> -> vector<8x10xf32>
    %c0_20 = arith.constant 0 : index
    %c0_21 = arith.constant 0 : index
    %25 = vector.load %arg9[%c0_20, %c0_21] : memref<1x10xf32, #tpu.memory_space<vmem>>, vector<1x10xf32>
    %26 = vector.broadcast %25 : vector<1x10xf32> to vector<8x10xf32>
    %27 = arith.addf %24, %26 : vector<8x10xf32>
    %cst_22 = arith.constant dense<0xFF800000> : vector<8xf32>
    %28 = vector.multi_reduction <maximumf>, %27, %cst_22 [1] : vector<8x10xf32> to vector<8xf32>
    %29 = vector.shape_cast %28 : vector<8xf32> to vector<8x1xf32>
    %30 = vector.broadcast %29 : vector<8x1xf32> to vector<8x10xf32>
    %31 = arith.subf %27, %30 : vector<8x10xf32>
    %32 = math.exp %31 : vector<8x10xf32>
    %cst_23 = arith.constant dense<0.000000e+00> : vector<8xf32>
    %33 = vector.multi_reduction <add>, %32, %cst_23 [1] : vector<8x10xf32> to vector<8xf32>
    %34 = vector.shape_cast %33 : vector<8xf32> to vector<8x1xf32>
    %35 = tpu.reciprocal %34 {approx = true} : vector<8x1xf32> -> vector<8x1xf32>
    %36 = vector.broadcast %35 : vector<8x1xf32> to vector<8x10xf32>
    %37 = arith.mulf %32, %36 : vector<8x10xf32>
    %c0_24 = arith.constant 0 : index
    %c0_25 = arith.constant 0 : index
    %38 = vector.load %arg10[%c0_24, %c0_25] : memref<8x10xf32, #tpu.memory_space<vmem>>, vector<8x10xf32>
    tpu.vector_store %arg10[%c0_24, %c0_25], %37 {strides = array<i32>} : memref<8x10xf32, #tpu.memory_space<vmem>>, vector<8x10xf32>,
    return
  }
  func.func @transform_0(%arg0: i32) -> (i32, i32) {
    %c0_i32 = arith.constant 0 : i32
    %c0_i32_0 = arith.constant 0 : i32
    return %arg0, %c0_i32 : i32, i32
  }
  func.func @transform_1(%arg0: i32) -> (i32, i32) {
    %c0_i32 = arith.constant 0 : i32
    %c0_i32_0 = arith.constant 0 : i32
    %c0_i32_1 = arith.constant 0 : i32
    return %c0_i32, %c0_i32_0 : i32, i32
  }
  func.func @transform_2(%arg0: i32) -> (i32, i32) {
    %c0_i32 = arith.constant 0 : i32
    %c0_i32_0 = arith.constant 0 : i32
    %c0_i32_1 = arith.constant 0 : i32
    return %c0_i32, %c0_i32_0 : i32, i32
  }
  func.func @transform_3(%arg0: i32) -> (i32, i32) {
    %c0_i32 = arith.constant 0 : i32
    %c0_i32_0 = arith.constant 0 : i32
    %c0_i32_1 = arith.constant 0 : i32
    return %c0_i32, %c0_i32_0 : i32, i32
  }
  func.func @transform_4(%arg0: i32) -> (i32, i32) {
    %c0_i32 = arith.constant 0 : i32
    %c0_i32_0 = arith.constant 0 : i32
    %c0_i32_1 = arith.constant 0 : i32
    return %c0_i32, %c0_i32_0 : i32, i32
  }
  func.func @transform_5(%arg0: i32) -> (i32, i32) {
    %c0_i32 = arith.constant 0 : i32
    %c0_i32_0 = arith.constant 0 : i32
    %c0_i32_1 = arith.constant 0 : i32
    return %c0_i32, %c0_i32_0 : i32, i32
  }
  func.func @transform_6(%arg0: i32) -> (i32, i32) {
    %c0_i32 = arith.constant 0 : i32
    %c0_i32_0 = arith.constant 0 : i32
    %c0_i32_1 = arith.constant 0 : i32
    return %c0_i32, %c0_i32_0 : i32, i32
  }
  func.func @transform_7(%arg0: i32) -> (i32, i32) {
    %c0_i32 = arith.constant 0 : i32
    %c0_i32_0 = arith.constant 0 : i32
    %c0_i32_1 = arith.constant 0 : i32
    return %c0_i32, %c0_i32_0 : i32, i32
  }
  func.func @transform_8(%arg0: i32) -> (i32, i32) {
    %c0_i32 = arith.constant 0 : i32
    %c0_i32_0 = arith.constant 0 : i32
    %c0_i32_1 = arith.constant 0 : i32
    return %c0_i32, %c0_i32_0 : i32, i32
  }
  func.func @transform_9(%arg0: i32) -> (i32, i32) {
    %c0_i32 = arith.constant 0 : i32
    %c0_i32_0 = arith.constant 0 : i32
    return %arg0, %c0_i32 : i32, i32
  }
}

</mosaic_0001>

<llo_original>
// kernel: tpu_custom_call.1
$region0: #{tpu_custom_call.1}
  #allocation0 [shape = 'u32[]', space=smem, size = 0x4, offset = 0x4, fixed_abs, tag = 'smem constant byte address 0x4 - core index']
  #allocation1 [shape = 'u32[72,128]{1,0:T(1,128)}', space=vmem, size = 0x9000, scoped, tag = 'internal scratch']
  %s0 = inlined_call_operand.vmem [shape: bf16[8,784], index: 0, kind: input, shape index: {}]
  %s1 = inlined_call_operand.hbm [shape: bf16[784,128], index: 1, kind: input, shape index: {}]
  %s2 = inlined_call_operand.vmem [shape: f32[1,128], index: 2, kind: input, shape index: {}]
  %s3 = inlined_call_operand.vmem [shape: bf16[128,64], index: 3, kind: input, shape index: {}]
  %s4 = inlined_call_operand.vmem [shape: f32[1,64], index: 4, kind: input, shape index: {}]
  %s5 = inlined_call_operand.vmem [shape: bf16[64,32], index: 5, kind: input, shape index: {}]
  %s6 = inlined_call_operand.vmem [shape: f32[1,32], index: 6, kind: input, shape index: {}]
  %s7 = inlined_call_operand.vmem [shape: bf16[32,10], index: 7, kind: input, shape index: {}]
  %s8 = inlined_call_operand.vmem [shape: f32[1,10], index: 8, kind: input, shape index: {}]
  %s9 = inlined_call_operand.hbm [shape: f32[8,10], index: 9, kind: output, shape index: {}]
  %s10 = sld [smem:[#allocation0]]
  $region50: #{tpu_custom_call.1} parent=0
    _
  %s12 = ssub.s32 1, %s10
  %s13 = scalar_select 0, %s12, %s10
  $region1: #{tpu_custom_call.1} parent=0
    #allocation2 [shape = 'u8[200704]{0}', space=vmem, size = 0x31000, scoped, tag = 'input window, operand 1, single buffered']
    #allocation3 [shape = 's32[1]{0}', space=sflag, size = 0x4, scoped, tag = 'scoped memory for tpu_custom_call.1']
    #allocation4 [shape = 's32[1]{0}', space=sflag, size = 0x4, scoped, tag = 'scoped memory for tpu_custom_call.1']
    #allocation5 [shape = 'u8[4096]{0}', space=vmem, size = 0x1000, scoped, tag = 'output window, operand 0, single buffered']
    %14 = vsyncpa [#allocation3], 0
    %15 = vsyncpa [#allocation4], 0
    // Predicated region
    $region2: #{tpu_custom_call.1} parent=1 // pred_check
      _
    $region3: #{tpu_custom_call.1} parent=1 // pred_check_branch
      %17 = sbr.rel (0) target = $region5
    $region4: #{tpu_custom_call.1} parent=1 // pred_region
      _
    $region5: #{tpu_custom_call.1} parent=1 // pred_fallthru
      _
    // Predicated region
    $region6: #{tpu_custom_call.1} parent=1 // pred_check
      _
    $region7: #{tpu_custom_call.1} parent=1 // pred_check_branch
      %19 = sbr.rel (0) target = $region9
    $region8: #{tpu_custom_call.1} parent=1 // pred_region
      %21 = vsyncadd [#allocation3], 0
      %s22 = sshll.u32 %s1, 4
      %s23 = int_to_ptr.hbm [resolvable:$true] %s22
      %s24 = sshll.u32 [#allocation2], 4
      %s25 = int_to_ptr.vmem [resolvable:$true] %s24
      %30 = dma.hbm_to_vmem [thread:$0]  %s23, 6272, %s25, [#allocation3], 64, 64, 4
    $region9: #{tpu_custom_call.1} parent=1 // pred_fallthru
      _
    // Predicated region
    $region10: #{tpu_custom_call.1} parent=1 // pred_check
      _
    $region11: #{tpu_custom_call.1} parent=1 // pred_check_branch
      %32 = sbr.rel (0) target = $region13
    $region12: #{tpu_custom_call.1} parent=1 // pred_region
      _
    $region13: #{tpu_custom_call.1} parent=1 // pred_fallthru
      _
    // Predicated region
    $region14: #{tpu_custom_call.1} parent=1 // pred_check
      _
    $region15: #{tpu_custom_call.1} parent=1 // pred_check_branch
      %34 = sbr.rel (0) target = $region17
    $region16: #{tpu_custom_call.1} parent=1 // pred_region
      _
    $region17: #{tpu_custom_call.1} parent=1 // pred_fallthru
      _
    // Predicated region
    $region18: #{tpu_custom_call.1} parent=1 // pred_check
      _
    $region19: #{tpu_custom_call.1} parent=1 // pred_check_branch
      %36 = sbr.rel (0) target = $region21
    $region20: #{tpu_custom_call.1} parent=1 // pred_region
      _
    $region21: #{tpu_custom_call.1} parent=1 // pred_fallthru
      _
    // Predicated region
    $region22: #{tpu_custom_call.1} parent=1 // pred_check
      _
    $region23: #{tpu_custom_call.1} parent=1 // pred_check_branch
      %38 = sbr.rel (0) target = $region25
    $region24: #{tpu_custom_call.1} parent=1 // pred_region
      _
    $region25: #{tpu_custom_call.1} parent=1 // pred_fallthru
      _
    // Predicated region
    $region26: #{tpu_custom_call.1} parent=1 // pred_check
      _
    $region27: #{tpu_custom_call.1} parent=1 // pred_check_branch
      %40 = sbr.rel (0) target = $region29
    $region28: #{tpu_custom_call.1} parent=1 // pred_region
      _
    $region29: #{tpu_custom_call.1} parent=1 // pred_fallthru
      _
    // Predicated region
    $region30: #{tpu_custom_call.1} parent=1 // pred_check
      _
    $region31: #{tpu_custom_call.1} parent=1 // pred_check_branch
      %42 = sbr.rel (0) target = $region33
    $region32: #{tpu_custom_call.1} parent=1 // pred_region
      _
    $region33: #{tpu_custom_call.1} parent=1 // pred_fallthru
      _
    // Predicated region
    $region34: #{tpu_custom_call.1} parent=1 // pred_check
      _
    $region35: #{tpu_custom_call.1} parent=1 // pred_check_branch
      %44 = sbr.rel (0) target = $region37
    $region36: #{tpu_custom_call.1} parent=1 // pred_region
      _
    $region37: #{tpu_custom_call.1} parent=1 // pred_fallthru
      _
    // Predicated region
    $region38: #{tpu_custom_call.1} parent=1 // pred_check
      _
    $region39: #{tpu_custom_call.1} parent=1 // pred_check_branch
      %46 = sbr.rel (0) target = $region41
    $region40: #{tpu_custom_call.1} parent=1 // pred_region
      %48 = dma.done [#allocation3], 6272
    $region41: #{tpu_custom_call.1} parent=1 // pred_fallthru
      _
    %v50 = vld [vmem:[%s0] sm:$0xff]
    %v51 = vld [vmem:[%s0 + $0x8] sm:$0xff]
    %v52 = vld [vmem:[%s0 + $0x10] sm:$0xff]
    %v53 = vld [vmem:[%s0 + $0x18] sm:$0xf]
    %v54 = vld [vmem:[#allocation2] sm:$0xf]
    %v55 = vld [vmem:[#allocation2 + $0x4] sm:$0xf]
    %v56 = vld [vmem:[#allocation2 + $0x8] sm:$0xf]
    %v57 = vld [vmem:[#allocation2 + $0xc] sm:$0xf]
    %v58 = vld [vmem:[#allocation2 + $0x10] sm:$0xf]
    %v59 = vld [vmem:[#allocation2 + $0x14] sm:$0xf]
    %v60 = vld [vmem:[#allocation2 + $0x18] sm:$0xf]
    %v61 = vld [vmem:[#allocation2 + $0x1c] sm:$0xf]
    %v62 = vld [vmem:[#allocation2 + $0x20] sm:$0xf]
    %v63 = vld [vmem:[#allocation2 + $0x24] sm:$0xf]
    %v64 = vld [vmem:[#allocation2 + $0x28] sm:$0xf]
    %v65 = vld [vmem:[#allocation2 + $0x2c] sm:$0xf]
    %v66 = vld [vmem:[#allocation2 + $0x30] sm:$0xf]
    %v67 = vld [vmem:[#allocation2 + $0x34] sm:$0xf]
    %v68 = vld [vmem:[#allocation2 + $0x38] sm:$0xf]
    %v69 = vld [vmem:[#allocation2 + $0x3c] sm:$0xf]
    %v70 = vld [vmem:[#allocation2 + $0x40] sm:$0xf]
    %v71 = vld [vmem:[#allocation2 + $0x44] sm:$0xf]
    %v72 = vld [vmem:[#allocation2 + $0x48] sm:$0xf]
    %v73 = vld [vmem:[#allocation2 + $0x4c] sm:$0xf]
    %v74 = vld [vmem:[#allocation2 + $0x50] sm:$0xf]
    %v75 = vld [vmem:[#allocation2 + $0x54] sm:$0xf]
    %v76 = vld [vmem:[#allocation2 + $0x58] sm:$0xf]
    %v77 = vld [vmem:[#allocation2 + $0x5c] sm:$0xf]
    %v78 = vld [vmem:[#allocation2 + $0x60] sm:$0xf]
    %v79 = vld [vmem:[#allocation2 + $0x64] sm:$0xf]
    %v80 = vld [vmem:[#allocation2 + $0x68] sm:$0xf]
    %v81 = vld [vmem:[#allocation2 + $0x6c] sm:$0xf]
    %v82 = vld [vmem:[#allocation2 + $0x70] sm:$0xf]
    %v83 = vld [vmem:[#allocation2 + $0x74] sm:$0xf]
    %v84 = vld [vmem:[#allocation2 + $0x78] sm:$0xf]
    %v85 = vld [vmem:[#allocation2 + $0x7c] sm:$0xf]
    %v86 = vld [vmem:[#allocation2 + $0x80] sm:$0xf]
    %v87 = vld [vmem:[#allocation2 + $0x84] sm:$0xf]
    %v88 = vld [vmem:[#allocation2 + $0x88] sm:$0xf]
    %v89 = vld [vmem:[#allocation2 + $0x8c] sm:$0xf]
    %v90 = vld [vmem:[#allocation2 + $0x90] sm:$0xf]
    %v91 = vld [vmem:[#allocation2 + $0x94] sm:$0xf]
    %v92 = vld [vmem:[#allocation2 + $0x98] sm:$0xf]
    %v93 = vld [vmem:[#allocation2 + $0x9c] sm:$0xf]
    %v94 = vld [vmem:[#allocation2 + $0xa0] sm:$0xf]
    %v95 = vld [vmem:[#allocation2 + $0xa4] sm:$0xf]
    %v96 = vld [vmem:[#allocation2 + $0xa8] sm:$0xf]
    %v97 = vld [vmem:[#allocation2 + $0xac] sm:$0xf]
    %v98 = vld [vmem:[#allocation2 + $0xb0] sm:$0xf]
    %v99 = vld [vmem:[#allocation2 + $0xb4] sm:$0xf]
    %v100 = vld [vmem:[#allocation2 + $0xb8] sm:$0xf]
    %v101 = vld [vmem:[#allocation2 + $0xbc] sm:$0xf]
    %v102 = vld [vmem:[#allocation2 + $0xc0] sm:$0xf]
    %v103 = vld [vmem:[#allocation2 + $0xc4] sm:$0xf]
    %v104 = vld [vmem:[#allocation2 + $0xc8] sm:$0xf]
    %v105 = vld [vmem:[#allocation2 + $0xcc] sm:$0xf]
    %v106 = vld [vmem:[#allocation2 + $0xd0] sm:$0xf]
    %v107 = vld [vmem:[#allocation2 + $0xd4] sm:$0xf]
    %v108 = vld [vmem:[#allocation2 + $0xd8] sm:$0xf]
    %v109 = vld [vmem:[#allocation2 + $0xdc] sm:$0xf]
    %v110 = vld [vmem:[#allocation2 + $0xe0] sm:$0xf]
    %v111 = vld [vmem:[#allocation2 + $0xe4] sm:$0xf]
    %v112 = vld [vmem:[#allocation2 + $0xe8] sm:$0xf]
    %v113 = vld [vmem:[#allocation2 + $0xec] sm:$0xf]
    %v114 = vld [vmem:[#allocation2 + $0xf0] sm:$0xf]
    %v115 = vld [vmem:[#allocation2 + $0xf4] sm:$0xf]
    %v116 = vld [vmem:[#allocation2 + $0xf8] sm:$0xf]
    %v117 = vld [vmem:[#allocation2 + $0xfc] sm:$0xf]
    %v118 = vld [vmem:[#allocation2 + $0x100] sm:$0xf]
    %v119 = vld [vmem:[#allocation2 + $0x104] sm:$0xf]
    %v120 = vld [vmem:[#allocation2 + $0x108] sm:$0xf]
    %v121 = vld [vmem:[#allocation2 + $0x10c] sm:$0xf]
    %v122 = vld [vmem:[#allocation2 + $0x110] sm:$0xf]
    %v123 = vld [vmem:[#allocation2 + $0x114] sm:$0xf]
    %v124 = vld [vmem:[#allocation2 + $0x118] sm:$0xf]
    %v125 = vld [vmem:[#allocation2 + $0x11c] sm:$0xf]
    %v126 = vld [vmem:[#allocation2 + $0x120] sm:$0xf]
    %v127 = vld [vmem:[#allocation2 + $0x124] sm:$0xf]
    %v128 = vld [vmem:[#allocation2 + $0x128] sm:$0xf]
    %v129 = vld [vmem:[#allocation2 + $0x12c] sm:$0xf]
    %v130 = vld [vmem:[#allocation2 + $0x130] sm:$0xf]
    %v131 = vld [vmem:[#allocation2 + $0x134] sm:$0xf]
    %v132 = vld [vmem:[#allocation2 + $0x138] sm:$0xf]
    %v133 = vld [vmem:[#allocation2 + $0x13c] sm:$0xf]
    %v134 = vld [vmem:[#allocation2 + $0x140] sm:$0xf]
    %v135 = vld [vmem:[#allocation2 + $0x144] sm:$0xf]
    %v136 = vld [vmem:[#allocation2 + $0x148] sm:$0xf]
    %v137 = vld [vmem:[#allocation2 + $0x14c] sm:$0xf]
    %v138 = vld [vmem:[#allocation2 + $0x150] sm:$0xf]
    %v139 = vld [vmem:[#allocation2 + $0x154] sm:$0xf]
    %v140 = vld [vmem:[#allocation2 + $0x158] sm:$0xf]
    %v141 = vld [vmem:[#allocation2 + $0x15c] sm:$0xf]
    %v142 = vld [vmem:[#allocation2 + $0x160] sm:$0xf]
    %v143 = vld [vmem:[#allocation2 + $0x164] sm:$0xf]
    %v144 = vld [vmem:[#allocation2 + $0x168] sm:$0xf]
    %v145 = vld [vmem:[#allocation2 + $0x16c] sm:$0xf]
    %v146 = vld [vmem:[#allocation2 + $0x170] sm:$0xf]
    %v147 = vld [vmem:[#allocation2 + $0x174] sm:$0xf]
    %v148 = vld [vmem:[#allocation2 + $0x178] sm:$0xf]
    %v149 = vld [vmem:[#allocation2 + $0x17c] sm:$0xf]
    %v150 = vld [vmem:[#allocation2 + $0x180] sm:$0xf]
    %v151 = vld [vmem:[#allocation2 + $0x184] sm:$0xf]
    %v152 = vld [vmem:[%s2] sm:$0x1]
    %v154 = vperm.slane %v152, 0
    %v160 = vunpack.c.l.b16 %v50
    %v161 = vunpack.c.h.b16 %v50
    %v162 = vunpack.c.l.b16 %v51
    %v163 = vunpack.c.h.b16 %v51
    %v164 = vunpack.c.l.b16 %v52
    %v165 = vunpack.c.h.b16 %v52
    %v166 = vunpack.c.l.b16 %v53
    %v167 = vpack.c.b16 %v160, %v160
    %v168 = vpack.c.b16 %v161, %v161
    %v169 = vpack.c.b16 %v162, %v162
    %v170 = vpack.c.b16 %v163, %v163
    %v171 = vpack.c.b16 %v164, %v164
    %v172 = vpack.c.b16 %v165, %v165
    %v173 = vpack.c.b16 %v166, %v166
    %v278 = vunpack.c.l.b16 %v54
    %v279 = vunpack.c.l.b16 %v55
    %v280 = vunpack.c.l.b16 %v56
    %v281 = vunpack.c.l.b16 %v57
    %v282 = vunpack.c.l.b16 %v58
    %v283 = vunpack.c.l.b16 %v59
    %v284 = vunpack.c.l.b16 %v60
    %v285 = vunpack.c.l.b16 %v61
    %v286 = vunpack.c.l.b16 %v62
    %v287 = vunpack.c.l.b16 %v63
    %v288 = vunpack.c.l.b16 %v64
    %v289 = vunpack.c.l.b16 %v65
    %v290 = vunpack.c.l.b16 %v66
    %v291 = vunpack.c.l.b16 %v67
    %v292 = vunpack.c.l.b16 %v68
    %v293 = vunpack.c.l.b16 %v69
    %v294 = vunpack.c.l.b16 %v70
    %v295 = vunpack.c.l.b16 %v71
    %v296 = vunpack.c.l.b16 %v72
    %v297 = vunpack.c.l.b16 %v73
    %v298 = vunpack.c.l.b16 %v74
    %v299 = vunpack.c.l.b16 %v75
    %v300 = vunpack.c.l.b16 %v76
    %v301 = vunpack.c.l.b16 %v77
    %v302 = vunpack.c.l.b16 %v78
    %v303 = vunpack.c.l.b16 %v79
    %v304 = vunpack.c.l.b16 %v80
    %v305 = vunpack.c.l.b16 %v81
    %v306 = vunpack.c.l.b16 %v82
    %v307 = vunpack.c.l.b16 %v83
    %v308 = vunpack.c.l.b16 %v84
    %v309 = vunpack.c.l.b16 %v85
    %v310 = vunpack.c.l.b16 %v86
    %v311 = vunpack.c.l.b16 %v87
    %v312 = vunpack.c.l.b16 %v88
    %v313 = vunpack.c.l.b16 %v89
    %v314 = vunpack.c.l.b16 %v90
    %v315 = vunpack.c.l.b16 %v91
    %v316 = vunpack.c.l.b16 %v92
    %v317 = vunpack.c.l.b16 %v93
    %v318 = vunpack.c.l.b16 %v94
    %v319 = vunpack.c.l.b16 %v95
    %v320 = vunpack.c.l.b16 %v96
    %v321 = vunpack.c.l.b16 %v97
    %v322 = vunpack.c.l.b16 %v98
    %v323 = vunpack.c.l.b16 %v99
    %v324 = vunpack.c.l.b16 %v100
    %v325 = vunpack.c.l.b16 %v101
    %v326 = vunpack.c.l.b16 %v102
    %v327 = vunpack.c.l.b16 %v103
    %v328 = vunpack.c.l.b16 %v104
    %v329 = vunpack.c.l.b16 %v105
    %v330 = vunpack.c.l.b16 %v106
    %v331 = vunpack.c.l.b16 %v107
    %v332 = vunpack.c.l.b16 %v108
    %v333 = vunpack.c.l.b16 %v109
    %v334 = vunpack.c.l.b16 %v110
    %v335 = vunpack.c.l.b16 %v111
    %v336 = vunpack.c.l.b16 %v112
    %v337 = vunpack.c.l.b16 %v113
    %v338 = vunpack.c.l.b16 %v114
    %v339 = vunpack.c.l.b16 %v115
    %v340 = vunpack.c.l.b16 %v116
    %v341 = vunpack.c.l.b16 %v117
    %v342 = vunpack.c.l.b16 %v118
    %v343 = vunpack.c.l.b16 %v119
    %v344 = vunpack.c.l.b16 %v120
    %v345 = vunpack.c.l.b16 %v121
    %v346 = vunpack.c.l.b16 %v122
    %v347 = vunpack.c.l.b16 %v123
    %v348 = vunpack.c.l.b16 %v124
    %v349 = vunpack.c.l.b16 %v125
    %v350 = vunpack.c.l.b16 %v126
    %v351 = vunpack.c.l.b16 %v127
    %v352 = vunpack.c.l.b16 %v128
    %v353 = vunpack.c.l.b16 %v129
    %v354 = vunpack.c.l.b16 %v130
    %v355 = vunpack.c.l.b16 %v131
    %v356 = vunpack.c.l.b16 %v132
    %v357 = vunpack.c.l.b16 %v133
    %v358 = vunpack.c.l.b16 %v134
    %v359 = vunpack.c.l.b16 %v135
    %v360 = vunpack.c.l.b16 %v136
    %v361 = vunpack.c.l.b16 %v137
    %v362 = vunpack.c.l.b16 %v138
    %v363 = vunpack.c.l.b16 %v139
    %v364 = vunpack.c.l.b16 %v140
    %v365 = vunpack.c.l.b16 %v141
    %v366 = vunpack.c.l.b16 %v142
    %v367 = vunpack.c.l.b16 %v143
    %v368 = vunpack.c.l.b16 %v144
    %v369 = vunpack.c.l.b16 %v145
    %v370 = vunpack.c.l.b16 %v146
    %v371 = vunpack.c.l.b16 %v147
    %v372 = vunpack.c.l.b16 %v148
    %v373 = vunpack.c.l.b16 %v149
    %v374 = vunpack.c.l.b16 %v150
    %v375 = vunpack.c.l.b16 %v151
    %v376 = vpack.c.b16 %v279, %v278
    %v377 = vpack.c.b16 %v281, %v280
    %v378 = vpack.c.b16 %v283, %v282
    %v379 = vpack.c.b16 %v285, %v284
    %v380 = vpack.c.b16 %v287, %v286
    %v381 = vpack.c.b16 %v289, %v288
    %v382 = vpack.c.b16 %v291, %v290
    %v383 = vpack.c.b16 %v293, %v292
    %v384 = vpack.c.b16 %v295, %v294
    %v385 = vpack.c.b16 %v297, %v296
    %v386 = vpack.c.b16 %v299, %v298
    %v387 = vpack.c.b16 %v301, %v300
    %v388 = vpack.c.b16 %v303, %v302
    %v389 = vpack.c.b16 %v305, %v304
    %v390 = vpack.c.b16 %v307, %v306
    %v391 = vpack.c.b16 %v309, %v308
    %v392 = vpack.c.b16 %v311, %v310
    %v393 = vpack.c.b16 %v313, %v312
    %v394 = vpack.c.b16 %v315, %v314
    %v395 = vpack.c.b16 %v317, %v316
    %v396 = vpack.c.b16 %v319, %v318
    %v397 = vpack.c.b16 %v321, %v320
    %v398 = vpack.c.b16 %v323, %v322
    %v399 = vpack.c.b16 %v325, %v324
    %v400 = vpack.c.b16 %v327, %v326
    %v401 = vpack.c.b16 %v329, %v328
    %v402 = vpack.c.b16 %v331, %v330
    %v403 = vpack.c.b16 %v333, %v332
    %v404 = vpack.c.b16 %v335, %v334
    %v405 = vpack.c.b16 %v337, %v336
    %v406 = vpack.c.b16 %v339, %v338
    %v407 = vpack.c.b16 %v341, %v340
    %v408 = vpack.c.b16 %v343, %v342
    %v409 = vpack.c.b16 %v345, %v344
    %v410 = vpack.c.b16 %v347, %v346
    %v411 = vpack.c.b16 %v349, %v348
    %v412 = vpack.c.b16 %v351, %v350
    %v413 = vpack.c.b16 %v353, %v352
    %v414 = vpack.c.b16 %v355, %v354
    %v415 = vpack.c.b16 %v357, %v356
    %v416 = vpack.c.b16 %v359, %v358
    %v417 = vpack.c.b16 %v361, %v360
    %v418 = vpack.c.b16 %v363, %v362
    %v419 = vpack.c.b16 %v365, %v364
    %v420 = vpack.c.b16 %v367, %v366
    %v421 = vpack.c.b16 %v369, %v368
    %v422 = vpack.c.b16 %v371, %v370
    %v423 = vpack.c.b16 %v373, %v372
    %v424 = vpack.c.b16 %v375, %v374
    %vm474 = vcmask 130048
    %v476 = vsel %vm474, %v173, 0
    %478 = vmatpush.bf16.msra.mxu0 %v383
    %479 = vmatpush.bf16.msra.mxu0 %v382
    %480 = vmatpush.bf16.msra.mxu0 %v381
    %481 = vmatpush.bf16.msra.mxu0 %v380
    %482 = vmatpush.bf16.msra.mxu0 %v379
    %483 = vmatpush.bf16.msra.mxu0 %v378
    %484 = vmatpush.bf16.msra.mxu0 %v377
    %485 = vmatpush.bf16.msra.mxu0 %v376
    %486 = vmatmul.bf16.gmra.mxu0 %v167
    %v487 = vpop.f32.mrf.mxu0
    %v488 = vadd.f32 %v154, %v487
    %v489 = vpop.f32.mrf.mxu0
    %490 = vdwg.mxu0
    %491 = vmatpush.bf16.msra.mxu0 %v391
    %492 = vmatpush.bf16.msra.mxu0 %v390
    %493 = vmatpush.bf16.msra.mxu0 %v389
    %494 = vmatpush.bf16.msra.mxu0 %v388
    %495 = vmatpush.bf16.msra.mxu0 %v387
    %496 = vmatpush.bf16.msra.mxu0 %v386
    %497 = vmatpush.bf16.msra.mxu0 %v385
    %498 = vmatpush.bf16.msra.mxu0 %v384
    %499 = vmatmul.bf16.gmra.mxu0 %v168
    %v500 = vpop.f32.mrf.mxu0
    %v501 = vadd.f32 %v488, %v500
    %v502 = vpop.f32.mrf.mxu0
    %503 = vdwg.mxu0
    %504 = vmatpush.bf16.msra.mxu0 %v399
    %505 = vmatpush.bf16.msra.mxu0 %v398
    %506 = vmatpush.bf16.msra.mxu0 %v397
    %507 = vmatpush.bf16.msra.mxu0 %v396
    %508 = vmatpush.bf16.msra.mxu0 %v395
    %509 = vmatpush.bf16.msra.mxu0 %v394
    %510 = vmatpush.bf16.msra.mxu0 %v393
    %511 = vmatpush.bf16.msra.mxu0 %v392
    %512 = vmatmul.bf16.gmra.mxu0 %v169
    %v513 = vpop.f32.mrf.mxu0
    %v514 = vadd.f32 %v501, %v513
    %v515 = vpop.f32.mrf.mxu0
    %516 = vdwg.mxu0
    %517 = vmatpush.bf16.msra.mxu0 %v407
    %518 = vmatpush.bf16.msra.mxu0 %v406
    %519 = vmatpush.bf16.msra.mxu0 %v405
    %520 = vmatpush.bf16.msra.mxu0 %v404
    %521 = vmatpush.bf16.msra.mxu0 %v403
    %522 = vmatpush.bf16.msra.mxu0 %v402
    %523 = vmatpush.bf16.msra.mxu0 %v401
    %524 = vmatpush.bf16.msra.mxu0 %v400
    %525 = vmatmul.bf16.gmra.mxu0 %v170
    %v526 = vpop.f32.mrf.mxu0
    %v527 = vadd.f32 %v514, %v526
    %v528 = vpop.f32.mrf.mxu0
    %529 = vdwg.mxu0
    %530 = vmatpush.bf16.msra.mxu0 %v415
    %531 = vmatpush.bf16.msra.mxu0 %v414
    %532 = vmatpush.bf16.msra.mxu0 %v413
    %533 = vmatpush.bf16.msra.mxu0 %v412
    %534 = vmatpush.bf16.msra.mxu0 %v411
    %535 = vmatpush.bf16.msra.mxu0 %v410
    %536 = vmatpush.bf16.msra.mxu0 %v409
    %537 = vmatpush.bf16.msra.mxu0 %v408
    %538 = vmatmul.bf16.gmra.mxu0 %v171
    %v539 = vpop.f32.mrf.mxu0
    %v540 = vadd.f32 %v527, %v539
    %v541 = vpop.f32.mrf.mxu0
    %542 = vdwg.mxu0
    %543 = vmatpush.bf16.msra.mxu0 %v423
    %544 = vmatpush.bf16.msra.mxu0 %v422
    %545 = vmatpush.bf16.msra.mxu0 %v421
    %546 = vmatpush.bf16.msra.mxu0 %v420
    %547 = vmatpush.bf16.msra.mxu0 %v419
    %548 = vmatpush.bf16.msra.mxu0 %v418
    %549 = vmatpush.bf16.msra.mxu0 %v417
    %550 = vmatpush.bf16.msra.mxu0 %v416
    %551 = vmatmul.bf16.gmra.mxu0 %v172
    %v552 = vpop.f32.mrf.mxu0
    %v553 = vadd.f32 %v540, %v552
    %v554 = vpop.f32.mrf.mxu0
    %555 = vdwg.mxu0
    %556 = vmatpush.bf16.msra.mxu0 0
    %557 = vmatpush.bf16.msra.mxu0 0
    %558 = vmatpush.bf16.msra.mxu0 0
    %559 = vmatpush.bf16.msra.mxu0 0
    %560 = vmatpush.bf16.msra.mxu0 0
    %561 = vmatpush.bf16.msra.mxu0 0
    %562 = vmatpush.bf16.msra.mxu0 0
    %563 = vmatpush.bf16.msra.mxu0 %v424
    %564 = vmatmul.bf16.gmra.mxu0 %v476
    %v565 = vpop.f32.mrf.mxu0
    %v566 = vadd.f32 %v553, %v565
    %v567 = vpop.f32.mrf.mxu0
    %568 = vdwg.mxu0
    %v569 = vpack.c.bf16 %v566, %v566
    %v570 = vld [vmem:[%s3] sm:$0xf]
    %v571 = vld [vmem:[%s3 + $0x4] sm:$0xf]
    %v572 = vld [vmem:[%s3 + $0x8] sm:$0xf]
    %v573 = vld [vmem:[%s3 + $0xc] sm:$0xf]
    %v574 = vld [vmem:[%s3 + $0x10] sm:$0xf]
    %v575 = vld [vmem:[%s3 + $0x14] sm:$0xf]
    %v576 = vld [vmem:[%s3 + $0x18] sm:$0xf]
    %v577 = vld [vmem:[%s3 + $0x1c] sm:$0xf]
    %v578 = vld [vmem:[%s3 + $0x20] sm:$0xf]
    %v579 = vld [vmem:[%s3 + $0x24] sm:$0xf]
    %v580 = vld [vmem:[%s3 + $0x28] sm:$0xf]
    %v581 = vld [vmem:[%s3 + $0x2c] sm:$0xf]
    %v582 = vld [vmem:[%s3 + $0x30] sm:$0xf]
    %v583 = vld [vmem:[%s3 + $0x34] sm:$0xf]
    %v584 = vld [vmem:[%s3 + $0x38] sm:$0xf]
    %v585 = vld [vmem:[%s3 + $0x3c] sm:$0xf]
    %v586 = vld [vmem:[%s4] sm:$0x1]
    %v588 = vperm.slane %v586, 0
    %v606 = vunpack.c.l.b16 %v570
    %v607 = vunpack.c.l.b16 %v571
    %v608 = vunpack.c.l.b16 %v572
    %v609 = vunpack.c.l.b16 %v573
    %v610 = vunpack.c.l.b16 %v574
    %v611 = vunpack.c.l.b16 %v575
    %v612 = vunpack.c.l.b16 %v576
    %v613 = vunpack.c.l.b16 %v577
    %v614 = vunpack.c.l.b16 %v578
    %v615 = vunpack.c.l.b16 %v579
    %v616 = vunpack.c.l.b16 %v580
    %v617 = vunpack.c.l.b16 %v581
    %v618 = vunpack.c.l.b16 %v582
    %v619 = vunpack.c.l.b16 %v583
    %v620 = vunpack.c.l.b16 %v584
    %v621 = vunpack.c.l.b16 %v585
    %v622 = vpack.c.b16 %v607, %v606
    %v623 = vpack.c.b16 %v609, %v608
    %v624 = vpack.c.b16 %v611, %v610
    %v625 = vpack.c.b16 %v613, %v612
    %v626 = vpack.c.b16 %v615, %v614
    %v627 = vpack.c.b16 %v617, %v616
    %v628 = vpack.c.b16 %v619, %v618
    %v629 = vpack.c.b16 %v621, %v620
    %638 = vmatpush.bf16.msra.mxu0 %v629
    %639 = vmatpush.bf16.msra.mxu0 %v628
    %640 = vmatpush.bf16.msra.mxu0 %v627
    %641 = vmatpush.bf16.msra.mxu0 %v626
    %642 = vmatpush.bf16.msra.mxu0 %v625
    %643 = vmatpush.bf16.msra.mxu0 %v624
    %644 = vmatpush.bf16.msra.mxu0 %v623
    %645 = vmatpush.bf16.msra.mxu0 %v622
    %646 = vmatmul.bf16.gmra.mxu0 %v569
    %v647 = vpop.f32.mrf.mxu0
    %v648 = vadd.f32 %v588, %v647
    %v649 = vpop.f32.mrf.mxu0
    %650 = vdwg.mxu0
    %v651 = vmax.f32 %v648, 0.0
    %v652 = vpack.c.bf16 %v651, %v651
    %v653 = vld [vmem:[%s5] sm:$0xf]
    %v654 = vld [vmem:[%s5 + $0x4] sm:$0xf]
    %v655 = vld [vmem:[%s5 + $0x8] sm:$0xf]
    %v656 = vld [vmem:[%s5 + $0xc] sm:$0xf]
    %v657 = vld [vmem:[%s5 + $0x10] sm:$0xf]
    %v658 = vld [vmem:[%s5 + $0x14] sm:$0xf]
    %v659 = vld [vmem:[%s5 + $0x18] sm:$0xf]
    %v660 = vld [vmem:[%s5 + $0x1c] sm:$0xf]
    %v661 = vld [vmem:[%s6] sm:$0x1]
    %v663 = vperm.slane %v661, 0
    %v673 = vunpack.c.l.b16 %v653
    %v674 = vunpack.c.l.b16 %v654
    %v675 = vunpack.c.l.b16 %v655
    %v676 = vunpack.c.l.b16 %v656
    %v677 = vunpack.c.l.b16 %v657
    %v678 = vunpack.c.l.b16 %v658
    %v679 = vunpack.c.l.b16 %v659
    %v680 = vunpack.c.l.b16 %v660
    %v681 = vpack.c.b16 %v674, %v673
    %v682 = vpack.c.b16 %v676, %v675
    %v683 = vpack.c.b16 %v678, %v677
    %v684 = vpack.c.b16 %v680, %v679
    %vm689 = vcmask 523264
    %v691 = vsel %vm689, %v652, 0
    %693 = vmatpush.bf16.msra.mxu0 0
    %694 = vmatpush.bf16.msra.mxu0 0
    %695 = vmatpush.bf16.msra.mxu0 0
    %696 = vmatpush.bf16.msra.mxu0 0
    %697 = vmatpush.bf16.msra.mxu0 %v684
    %698 = vmatpush.bf16.msra.mxu0 %v683
    %699 = vmatpush.bf16.msra.mxu0 %v682
    %700 = vmatpush.bf16.msra.mxu0 %v681
    %701 = vmatmul.bf16.gmra.mxu0 %v691
    %v702 = vpop.f32.mrf.mxu0
    %v703 = vadd.f32 %v663, %v702
    %v704 = vpop.f32.mrf.mxu0
    %705 = vdwg.mxu0
    %v706 = vmax.f32 %v703, 0.0
    %v707 = vpack.c.bf16 %v706, %v706
    %v708 = vld [vmem:[%s7] sm:$0xf]
    %v709 = vld [vmem:[%s7 + $0x4] sm:$0xf]
    %v710 = vld [vmem:[%s7 + $0x8] sm:$0xf]
    %v711 = vld [vmem:[%s7 + $0xc] sm:$0xf]
    %v712 = vld [vmem:[%s8] sm:$0x1]
    %v714 = vperm.slane %v712, 0
    %v720 = vunpack.c.l.b16 %v708
    %v721 = vunpack.c.l.b16 %v709
    %v722 = vunpack.c.l.b16 %v710
    %v723 = vunpack.c.l.b16 %v711
    %v724 = vpack.c.b16 %v721, %v720
    %v725 = vpack.c.b16 %v723, %v722
    %vm728 = vcmask 261120
    %v730 = vsel %vm728, %v707, 0
    %732 = vmatpush.bf16.msra.mxu0 0
    %733 = vmatpush.bf16.msra.mxu0 0
    %734 = vmatpush.bf16.msra.mxu0 0
    %735 = vmatpush.bf16.msra.mxu0 0
    %736 = vmatpush.bf16.msra.mxu0 0
    %737 = vmatpush.bf16.msra.mxu0 0
    %738 = vmatpush.bf16.msra.mxu0 %v725
    %739 = vmatpush.bf16.msra.mxu0 %v724
    %740 = vmatmul.bf16.gmra.mxu0 %v730
    %v741 = vpop.f32.mrf.mxu0
    %v742 = vadd.f32 %v714, %v741
    %v743 = vpop.f32.mrf.mxu0
    %744 = vdwg.mxu0
    %vm745 = vcmask 80896
    %v746 = vsel %vm745, %v742, -inf
    %747 = vmax.xlane.f32.xlu0 %v746
    %v748 = vpop.xlane.xlu0 %747
    %v749 = vsub.f32 %v742, %v748
    %v750 = vmul.f32 %v749, 1.442695
    %v751 = vpow.pop %v750
    %v752 = vsel %vm745, %v751, 0.0
    %753 = vadd.xlane.f32.xlu0 %v752
    %v754 = vpop.xlane.xlu0 %753
    %v755 = vrcp.pop %v754
    %v756 = vmul.f32 %v751, %v755
    %757 = vst.msk [vmem:[#allocation5] sm:$0xff] %vm745, %v756
    // Predicated region
    $region42: #{tpu_custom_call.1} parent=1 // pred_check
      _
    $region43: #{tpu_custom_call.1} parent=1 // pred_check_branch
      %759 = sbr.rel (0) target = $region45
    $region44: #{tpu_custom_call.1} parent=1 // pred_region
      %761 = vsyncadd [#allocation4], 0
      %s763 = sshll.u32 [#allocation5], 4
      %s764 = int_to_ptr.vmem [resolvable:$true] %s763
      %s765 = sshll.u32 %s9, 4
      %s766 = int_to_ptr.hbm [resolvable:$true] %s765
      %768 = dma.vmem_to_hbm [thread:$0]  %s764, 128, %s766, [#allocation4]
    $region45: #{tpu_custom_call.1} parent=1 // pred_fallthru
      _
    // Predicated region
    $region46: #{tpu_custom_call.1} parent=1 // pred_check
      _
    $region47: #{tpu_custom_call.1} parent=1 // pred_check_branch
      %770 = sbr.rel (0) target = $region49
    $region48: #{tpu_custom_call.1} parent=1 // pred_region
      %772 = dma.done [#allocation4], 128
    $region49: #{tpu_custom_call.1} parent=1 // pred_fallthru
      _
    %773 = vsyncpa [#allocation3], 1
    %774 = vsyncpa [#allocation4], 1

</llo_original>
